<compile_context>
chip_gen: v7x
topology: tpu7x:2x2x1
jax: 0.10.0
libtpu: 0.0.40
codegen_flags: <defaults>
</compile_context>

<pallas_src>
import functools

import jax
import jax.numpy as jnp
from jax import lax
from jax.experimental import pallas as pl
from jax.experimental.pallas import tpu as pltpu

LANE = 128      # lane width: last-dim padding target
SUBLANE = 8     # sublane width: batch-tile rounding


def _round_up(x, m):
    return (x + m - 1) // m * m


# ----------------------------- kernels --------------------------------------
def _two_layer_forward(x_ref, w1_ref, b1_ref, w2_ref, b2_ref):
    """hidden = x @ W1^T + b1 ; logits = hidden @ W2^T + b2 (torch (out,in) layout).

    dot_general contracts on dim 1 of both operands -> no transposes anywhere,
    f32 accumulation on the MXU regardless of operand dtype.
    """
    h = lax.dot_general(
        x_ref[...], w1_ref[...],
        dimension_numbers=(((1,), (1,)), ((), ())),   # contract the "in" dims
        preferred_element_type=jnp.float32,
    ) + b1_ref[...]
    logits = lax.dot_general(
        h.astype(w2_ref.dtype), w2_ref[...],
        dimension_numbers=(((1,), (1,)), ((), ())),
        preferred_element_type=jnp.float32,
    ) + b2_ref[...]
    return logits                                     # f32 (block_rows, out_pad)


def mlp_kernel(x_ref, w1_ref, b1_ref, w2_ref, b2_ref, o_ref):
    """Inference path: store lane-dense (padded) logits for this batch tile."""
    o_ref[...] = _two_layer_forward(
        x_ref, w1_ref, b1_ref, w2_ref, b2_ref).astype(o_ref.dtype)


def mlp_ce_kernel(x_ref, w1_ref, b1_ref, w2_ref, b2_ref, y_ref, loss_ref, *,
                  num_classes, batch_size, block_rows):
    """Fused MLP + mean cross-entropy (torch F.cross_entropy, integer targets).

    loss_ref is a (1,1) SMEM scalar accumulated across batch-grid steps and
    normalized by the true batch size on the last step.
    """
    step = pl.program_id(0)

    @pl.when(step == 0)
    def _init():
        loss_ref[0, 0] = jnp.float32(0.0)

    logits = _two_layer_forward(x_ref, w1_ref, b1_ref, w2_ref, b2_ref)
    bm, c_pad = logits.shape
    col = lax.broadcasted_iota(jnp.int32, (bm, c_pad), 1)

    # Padded class lanes must not participate in the logsumexp.
    masked = jnp.where(col < num_classes, logits, jnp.float32(-1e30))
    m = jnp.max(masked, axis=-1, keepdims=True)
    lse = m + jnp.log(jnp.sum(jnp.exp(masked - m), axis=-1, keepdims=True))

    # picked[i] = logits[i, y_i] via iota compare — no one-hot materialization.
    # (out-of-range labels contribute 0 instead of raising, as before)
    picked = jnp.sum(jnp.where(col == y_ref[...], logits, 0.0),
                     axis=-1, keepdims=True)

    # Mask batch rows that only exist because of tile padding.
    row = step * block_rows + lax.broadcasted_iota(jnp.int32, (bm, 1), 0)
    per_row = jnp.where(row < batch_size, lse - picked, 0.0)

    loss_ref[0, 0] += jnp.sum(per_row)

    @pl.when(step == pl.num_programs(0) - 1)
    def _finalize():
        loss_ref[0, 0] = loss_ref[0, 0] * jnp.float32(1.0 / batch_size)


# ----------------------------- wrappers --------------------------------------
def prepare_params(w1, b1, w2, b2, *, use_bf16=False):
    """One-time parameter prep (call at init, NOT per forward):
      * keeps torch (out, in) layout -> no per-call transposes,
      * zero-pads hidden / output dims to 128 lanes -> lane-dense kernel stores,
      * optionally casts weights to bf16 (f32 accumulation stays in-kernel;
        the right default for real layer sizes on v6e/v7x MXUs).
    Zero padding is semantics-preserving: padded hidden units are 0 and padded
    classes produce logit 0, which is masked/sliced away downstream.
    """
    h, in_dim = w1.shape
    o, h2 = w2.shape
    assert h2 == h
    hp, op = _round_up(h, LANE), _round_up(o, LANE)
    wdt = jnp.bfloat16 if use_bf16 else jnp.float32
    w1p = jnp.zeros((hp, in_dim), wdt).at[:h, :].set(w1.astype(wdt))
    b1p = jnp.zeros((1, hp), jnp.float32).at[0, :h].set(b1.astype(jnp.float32))
    w2p = jnp.zeros((op, hp), wdt).at[:o, :h].set(w2.astype(wdt))
    b2p = jnp.zeros((1, op), jnp.float32).at[0, :o].set(b2.astype(jnp.float32))
    return {"w1": w1p, "b1": b1p, "w2": w2p, "b2": b2p,
            "in": in_dim, "hidden": h, "out": o, "dtype": wdt}


def _common_specs(block_rows, in_dim, hp, op):
    """x is tiled over the batch grid; weights/biases stay VMEM-resident
    (index_map always (0,0)) across all grid steps."""
    x_spec = pl.BlockSpec((block_rows, in_dim), lambda b: (b, 0),
                          memory_space=pltpu.MemorySpace.VMEM)
    w_specs = [
        pl.BlockSpec((hp, in_dim), lambda b: (0, 0), memory_space=pltpu.MemorySpace.VMEM),
        pl.BlockSpec((1, hp), lambda b: (0, 0), memory_space=pltpu.MemorySpace.VMEM),
        pl.BlockSpec((op, hp), lambda b: (0, 0), memory_space=pltpu.MemorySpace.VMEM),
        pl.BlockSpec((1, op), lambda b: (0, 0), memory_space=pltpu.MemorySpace.VMEM),
    ]
    return x_spec, w_specs


# batch_tile=512 keeps (x tile + logits tile) * 2 pipeline buffers + both padded
# weight blocks well inside v7x's 32 MiB scoped VMEM at these widths; shrink it
# (or go bf16) before scaling hidden_size into the thousands on v7x.
def mlp_forward(x, params, *, batch_tile=512):
    """Inference path: one batch-gridded pallas_call writing lane-dense padded
    logits per tile; real classes sliced out afterwards."""
    n, in_dim = x.shape
    hp, op, o = params["w1"].shape[0], params["w2"].shape[0], params["out"]

    xin = x.astype(params["dtype"])
    block_rows = min(_round_up(n, SUBLANE), batch_tile)
    n_pad = _round_up(n, block_rows)
    if n_pad != n:
        xin = jnp.pad(xin, ((0, n_pad - n), (0, 0)))

    x_spec, w_specs = _common_specs(block_rows, in_dim, hp, op)
    logits = pl.pallas_call(
        mlp_kernel,
        out_shape=jax.ShapeDtypeStruct((n_pad, op), jnp.float32),
        grid=(n_pad // block_rows,),
        in_specs=[x_spec] + w_specs,
        out_specs=pl.BlockSpec((block_rows, op), lambda b: (b, 0),
                               memory_space=pltpu.MemorySpace.VMEM),
        compiler_params=pltpu.CompilerParams(
            # independent batch tiles -> shards across both v7x TensorCores;
            # harmless no-op on single-TC v5e/v6e.
            dimension_semantics=("parallel",),
        ),
    )(xin, params["w1"], params["b1"], params["w2"], params["b2"])
    return logits[:n, :o]


def mlp_ce_loss(x, labels, params, *, batch_tile=512):
    """Training path: a SINGLE fused pallas_call (MLP forward + mean CE).
    Labels travel as a tiny int32 (N,1) VMEM block; loss comes back via SMEM."""
    n, in_dim = x.shape
    hp, op, o = params["w1"].shape[0], params["w2"].shape[0], params["out"]

    xin = x.astype(params["dtype"])
    y = labels.astype(jnp.int32).reshape(n, 1)

    block_rows = min(_round_up(n, SUBLANE), batch_tile)
    n_pad = _round_up(n, block_rows)
    if n_pad != n:
        xin = jnp.pad(xin, ((0, n_pad - n), (0, 0)))
        y = jnp.pad(y, ((0, n_pad - n), (0, 0)))

    x_spec, w_specs = _common_specs(block_rows, in_dim, hp, op)
    y_spec = pl.BlockSpec((block_rows, 1), lambda b: (b, 0),
                          memory_space=pltpu.MemorySpace.VMEM)

    kernel = functools.partial(mlp_ce_kernel, num_classes=o,
                               batch_size=n, block_rows=block_rows)
    loss = pl.pallas_call(
        kernel,
        out_shape=jax.ShapeDtypeStruct((1, 1), jnp.float32),
        grid=(n_pad // block_rows,),
        in_specs=[x_spec] + w_specs + [y_spec],
        # scalar loss lives in SMEM: no (8,128)-padded vreg + masked store.
        out_specs=pl.BlockSpec(memory_space=pltpu.MemorySpace.SMEM),
        compiler_params=pltpu.CompilerParams(
            # the loss is accumulated across batch tiles -> reduction axis.
            dimension_semantics=("arbitrary",),
        ),
    )(xin, params["w1"], params["b1"], params["w2"], params["b2"], y)
    return loss[0, 0]


def torch_model_forward(x, params, y=None, *, batch_tile=512):
    """Mirrors TorchModel.forward: scalar CE loss if y is given, else logits."""
    if y is not None:
        return mlp_ce_loss(x, y, params, batch_tile=batch_tile)
    return mlp_forward(x, params, batch_tile=batch_tile)


# ----------------------------- main ------------------------------------------
if __name__ == "__main__":
    input_size, hidden_size, output_size = 32, 64, 16
    batch = 8

    key = jax.random.PRNGKey(0)
    kx, kw1, kb1, kw2, kb2, ky = jax.random.split(key, 6)

    x = jax.random.normal(kx, (batch, input_size), dtype=jnp.float32)
    # torch nn.Linear layout: weight (out, in), bias (out,)
    w1 = jax.random.normal(kw1, (hidden_size, input_size), dtype=jnp.float32) * 0.1
    b1 = jax.random.normal(kb1, (hidden_size,), dtype=jnp.float32) * 0.1
    w2 = jax.random.normal(kw2, (output_size, hidden_size), dtype=jnp.float32) * 0.1
    b2 = jax.random.normal(kb2, (output_size,), dtype=jnp.float32) * 0.1
    y = jax.random.randint(ky, (batch,), 0, output_size, dtype=jnp.int32)

    # one-time prep: padding + layout, NOT in the per-call hot path
    params = prepare_params(w1, b1, w2, b2, use_bf16=False)

    # inference path (y=None) -> logits
    logits = torch_model_forward(x, params)
    jax.block_until_ready(logits)

    # training path (y given) -> scalar cross-entropy loss (single fused kernel)
    loss = torch_model_forward(x, params, y)
    jax.block_until_ready(loss)

    assert logits.shape == (batch, output_size)
    assert loss.shape == ()

    # pure-JAX reference check
    ref_logits = (x @ w1.T + b1) @ w2.T + b2
    ref_lse = jax.scipy.special.logsumexp(ref_logits, axis=-1)
    ref_loss = jnp.mean(ref_lse - ref_logits[jnp.arange(batch), y])
    assert jnp.allclose(logits, ref_logits, rtol=1e-2, atol=1e-2)
    assert jnp.allclose(loss, ref_loss, rtol=1e-2, atol=1e-2)

    print("KERNEL_OK")
</pallas_src>

<mosaic_0001>
module attributes {stable_mosaic.version = 11 : i64} {
  func.func @mlp_kernel(%arg0: i32, %arg1: memref<8x32xf32, #tpu.memory_space<vmem>>, %arg2: memref<128x32xf32, #tpu.memory_space<vmem>>, %arg3: memref<1x128xf32, #tpu.memory_space<vmem>>, %arg4: memref<128x128xf32, #tpu.memory_space<vmem>>, %arg5: memref<1x128xf32, #tpu.memory_space<vmem>>, %arg6: memref<8x128xf32, #tpu.memory_space<vmem>>) attributes {dimension_semantics = [#tpu.dimension_semantics<parallel>], iteration_bounds = array<i64: 1>, scalar_prefetch = 0 : i64, scratch_operands = 0 : i64, tpu.core_type = #tpu.core_type<tc>, window_params = [{transform_indices = @transform_0, window_bounds = array<i64: 8, 32>}, {pipeline_mode = #tpu.pipeline_mode<synchronous>, transform_indices = @transform_1, window_bounds = array<i64: 128, 32>}, {pipeline_mode = #tpu.pipeline_mode<synchronous>, transform_indices = @transform_2, window_bounds = array<i64: 1, 128>}, {pipeline_mode = #tpu.pipeline_mode<synchronous>, transform_indices = @transform_3, window_bounds = array<i64: 128, 128>}, {pipeline_mode = #tpu.pipeline_mode<synchronous>, transform_indices = @transform_4, window_bounds = array<i64: 1, 128>}, {transform_indices = @transform_5, window_bounds = array<i64: 8, 128>}]} {
    %c0 = arith.constant 0 : index
    %c0_0 = arith.constant 0 : index
    %0 = vector.load %arg1[%c0, %c0_0] : memref<8x32xf32, #tpu.memory_space<vmem>>, vector<8x32xf32>
    %c0_1 = arith.constant 0 : index
    %c0_2 = arith.constant 0 : index
    %1 = vector.load %arg2[%c0_1, %c0_2] : memref<128x32xf32, #tpu.memory_space<vmem>>, vector<128x32xf32>
    %cst = arith.constant dense<0.000000e+00> : vector<8x128xf32>
    %2 = tpu.matmul %0, %1, %cst {dimension_numbers = #tpu.dot_dimension_numbers<[1], [1], [0], [0], [0, 0, 1, 0], [], []>} : vector<8x32xf32>, vector<128x32xf32>, vector<8x128xf32> -> vector<8x128xf32>
    %c0_3 = arith.constant 0 : index
    %c0_4 = arith.constant 0 : index
    %3 = vector.load %arg3[%c0_3, %c0_4] : memref<1x128xf32, #tpu.memory_space<vmem>>, vector<1x128xf32>
    %4 = vector.broadcast %3 : vector<1x128xf32> to vector<8x128xf32>
    %5 = arith.addf %2, %4 : vector<8x128xf32>
    %c0_5 = arith.constant 0 : index
    %c0_6 = arith.constant 0 : index
    %6 = vector.load %arg4[%c0_5, %c0_6] : memref<128x128xf32, #tpu.memory_space<vmem>>, vector<128x128xf32>
    %cst_7 = arith.constant dense<0.000000e+00> : vector<8x128xf32>
    %7 = tpu.matmul %5, %6, %cst_7 {dimension_numbers = #tpu.dot_dimension_numbers<[1], [1], [0], [0], [0, 0, 1, 0], [], []>} : vector<8x128xf32>, vector<128x128xf32>, vector<8x128xf32> -> vector<8x128xf32>
    %c0_8 = arith.constant 0 : index
    %c0_9 = arith.constant 0 : index
    %8 = vector.load %arg5[%c0_8, %c0_9] : memref<1x128xf32, #tpu.memory_space<vmem>>, vector<1x128xf32>
    %9 = vector.broadcast %8 : vector<1x128xf32> to vector<8x128xf32>
    %10 = arith.addf %7, %9 : vector<8x128xf32>
    %c0_10 = arith.constant 0 : index
    %c0_11 = arith.constant 0 : index
    %11 = vector.load %arg6[%c0_10, %c0_11] : memref<8x128xf32, #tpu.memory_space<vmem>>, vector<8x128xf32>
    tpu.vector_store %arg6[%c0_10, %c0_11], %10 {strides = array<i32>} : memref<8x128xf32, #tpu.memory_space<vmem>>, vector<8x128xf32>,
    return
  }
  func.func @transform_0(%arg0: i32) -> (i32, i32) {
    %c0_i32 = arith.constant 0 : i32
    %c0_i32_0 = arith.constant 0 : i32
    return %arg0, %c0_i32 : i32, i32
  }
  func.func @transform_1(%arg0: i32) -> (i32, i32) {
    %c0_i32 = arith.constant 0 : i32
    %c0_i32_0 = arith.constant 0 : i32
    %c0_i32_1 = arith.constant 0 : i32
    return %c0_i32, %c0_i32_0 : i32, i32
  }
  func.func @transform_2(%arg0: i32) -> (i32, i32) {
    %c0_i32 = arith.constant 0 : i32
    %c0_i32_0 = arith.constant 0 : i32
    %c0_i32_1 = arith.constant 0 : i32
    return %c0_i32, %c0_i32_0 : i32, i32
  }
  func.func @transform_3(%arg0: i32) -> (i32, i32) {
    %c0_i32 = arith.constant 0 : i32
    %c0_i32_0 = arith.constant 0 : i32
    %c0_i32_1 = arith.constant 0 : i32
    return %c0_i32, %c0_i32_0 : i32, i32
  }
  func.func @transform_4(%arg0: i32) -> (i32, i32) {
    %c0_i32 = arith.constant 0 : i32
    %c0_i32_0 = arith.constant 0 : i32
    %c0_i32_1 = arith.constant 0 : i32
    return %c0_i32, %c0_i32_0 : i32, i32
  }
  func.func @transform_5(%arg0: i32) -> (i32, i32) {
    %c0_i32 = arith.constant 0 : i32
    %c0_i32_0 = arith.constant 0 : i32
    return %arg0, %c0_i32 : i32, i32
  }
}

</mosaic_0001>

<llo_original>
// kernel: tpu_custom_call.1
$region0: #{tpu_custom_call.1}
  #allocation0 [shape = 'u32[]', space=smem, size = 0x4, offset = 0x4, fixed_abs, tag = 'smem constant byte address 0x4 - core index']
  #allocation1 [shape = 'u32[144,128]{1,0:T(1,128)}', space=vmem, size = 0x12000, scoped, tag = 'internal scratch']
  %s0 = inlined_call_operand.vmem [shape: f32[8,32], index: 0, kind: input, shape index: {}]
  %s1 = inlined_call_operand.vmem [shape: f32[128,32], index: 1, kind: input, shape index: {}]
  %s2 = inlined_call_operand.vmem [shape: f32[1,128], index: 2, kind: input, shape index: {}]
  %s3 = inlined_call_operand.vmem [shape: f32[128,128], index: 3, kind: input, shape index: {}]
  %s4 = inlined_call_operand.vmem [shape: f32[1,128], index: 4, kind: input, shape index: {}]
  %s5 = inlined_call_operand.hbm [shape: f32[8,128], index: 5, kind: output, shape index: {}]
  %s6 = sld [smem:[#allocation0]]
  $region30: #{tpu_custom_call.1} parent=0
    _
  %s8 = ssub.s32 1, %s6
  %s9 = scalar_select 0, %s8, %s6
  $region1: #{tpu_custom_call.1} parent=0
    #allocation2 [shape = 'u8[4096]{0}', space=vmem, size = 0x1000, scoped, tag = 'output window, operand 0, single buffered']
    #allocation3 [shape = 's32[1]{0}', space=sflag, size = 0x4, scoped, tag = 'scoped memory for tpu_custom_call.1']
    %10 = vsyncpa [#allocation3], 0
    // Predicated region
    $region2: #{tpu_custom_call.1} parent=1 // pred_check
      _
    $region3: #{tpu_custom_call.1} parent=1 // pred_check_branch
      %12 = sbr.rel (0) target = $region5
    $region4: #{tpu_custom_call.1} parent=1 // pred_region
      _
    $region5: #{tpu_custom_call.1} parent=1 // pred_fallthru
      _
    // Predicated region
    $region6: #{tpu_custom_call.1} parent=1 // pred_check
      _
    $region7: #{tpu_custom_call.1} parent=1 // pred_check_branch
      %14 = sbr.rel (0) target = $region9
    $region8: #{tpu_custom_call.1} parent=1 // pred_region
      _
    $region9: #{tpu_custom_call.1} parent=1 // pred_fallthru
      _
    // Predicated region
    $region10: #{tpu_custom_call.1} parent=1 // pred_check
      _
    $region11: #{tpu_custom_call.1} parent=1 // pred_check_branch
      %16 = sbr.rel (0) target = $region13
    $region12: #{tpu_custom_call.1} parent=1 // pred_region
      _
    $region13: #{tpu_custom_call.1} parent=1 // pred_fallthru
      _
    // Predicated region
    $region14: #{tpu_custom_call.1} parent=1 // pred_check
      _
    $region15: #{tpu_custom_call.1} parent=1 // pred_check_branch
      %18 = sbr.rel (0) target = $region17
    $region16: #{tpu_custom_call.1} parent=1 // pred_region
      _
    $region17: #{tpu_custom_call.1} parent=1 // pred_fallthru
      _
    // Predicated region
    $region18: #{tpu_custom_call.1} parent=1 // pred_check
      _
    $region19: #{tpu_custom_call.1} parent=1 // pred_check_branch
      %20 = sbr.rel (0) target = $region21
    $region20: #{tpu_custom_call.1} parent=1 // pred_region
      _
    $region21: #{tpu_custom_call.1} parent=1 // pred_fallthru
      _
    %v21 = vld [vmem:[%s0] sm:$0xff]
    %v22 = vld [vmem:[%s1] sm:$0xff]
    %v23 = vld [vmem:[%s1 + $0x8] sm:$0xff]
    %v24 = vld [vmem:[%s1 + $0x10] sm:$0xff]
    %v25 = vld [vmem:[%s1 + $0x18] sm:$0xff]
    %v26 = vld [vmem:[%s1 + $0x20] sm:$0xff]
    %v27 = vld [vmem:[%s1 + $0x28] sm:$0xff]
    %v28 = vld [vmem:[%s1 + $0x30] sm:$0xff]
    %v29 = vld [vmem:[%s1 + $0x38] sm:$0xff]
    %v30 = vld [vmem:[%s1 + $0x40] sm:$0xff]
    %v31 = vld [vmem:[%s1 + $0x48] sm:$0xff]
    %v32 = vld [vmem:[%s1 + $0x50] sm:$0xff]
    %v33 = vld [vmem:[%s1 + $0x58] sm:$0xff]
    %v34 = vld [vmem:[%s1 + $0x60] sm:$0xff]
    %v35 = vld [vmem:[%s1 + $0x68] sm:$0xff]
    %v36 = vld [vmem:[%s1 + $0x70] sm:$0xff]
    %v37 = vld [vmem:[%s1 + $0x78] sm:$0xff]
    %v38 = vld [vmem:[%s2] sm:$0x1]
    %v40 = vlaneseq
    %v41 = vshrl.u32 %v40, 7
    %v42 = vsub.s32 0, %v41
    %v43 = vrot.slane %v38, %v42
    %vm45 = vcmask 261120
    %v47 = vsel %vm45, %v21, 0
    %v50 = vsel %vm45, %v22, 0
    %v53 = vsel %vm45, %v23, 0
    %v56 = vsel %vm45, %v24, 0
    %v59 = vsel %vm45, %v25, 0
    %v62 = vsel %vm45, %v26, 0
    %v65 = vsel %vm45, %v27, 0
    %v68 = vsel %vm45, %v28, 0
    %v71 = vsel %vm45, %v29, 0
    %v74 = vsel %vm45, %v30, 0
    %v77 = vsel %vm45, %v31, 0
    %v80 = vsel %vm45, %v32, 0
    %v83 = vsel %vm45, %v33, 0
    %v86 = vsel %vm45, %v34, 0
    %v89 = vsel %vm45, %v35, 0
    %v92 = vsel %vm45, %v36, 0
    %v95 = vsel %vm45, %v37, 0
    %97 = vmatprep.subr.mxu0 0.0
    %98 = vmatpush1.xpose.msra.mxu0 %v50
    %99 = vmatprep.subr.mxu0 0.0
    %100 = vmatpush1.xpose.msra.mxu0 %v53
    %101 = vmatprep.subr.mxu0 0.0
    %102 = vmatpush1.xpose.msra.mxu0 %v56
    %103 = vmatprep.subr.mxu0 0.0
    %104 = vmatpush1.xpose.msra.mxu0 %v59
    %105 = vmatprep.subr.mxu0 0.0
    %106 = vmatpush1.xpose.msra.mxu0 %v62
    %107 = vmatprep.subr.mxu0 0.0
    %108 = vmatpush1.xpose.msra.mxu0 %v65
    %109 = vmatprep.subr.mxu0 0.0
    %110 = vmatpush1.xpose.msra.mxu0 %v68
    %111 = vmatprep.subr.mxu0 0.0
    %112 = vmatpush1.xpose.msra.mxu0 %v71
    %113 = vmatprep.subr.mxu0 0.0
    %114 = vmatpush1.xpose.msra.mxu0 %v74
    %115 = vmatprep.subr.mxu0 0.0
    %116 = vmatpush1.xpose.msra.mxu0 %v77
    %117 = vmatprep.subr.mxu0 0.0
    %118 = vmatpush1.xpose.msra.mxu0 %v80
    %119 = vmatprep.subr.mxu0 0.0
    %120 = vmatpush1.xpose.msra.mxu0 %v83
    %121 = vmatprep.subr.mxu0 0.0
    %122 = vmatpush1.xpose.msra.mxu0 %v86
    %123 = vmatprep.subr.mxu0 0.0
    %124 = vmatpush1.xpose.msra.mxu0 %v89
    %125 = vmatprep.subr.mxu0 0.0
    %126 = vmatpush1.xpose.msra.mxu0 %v92
    %127 = vmatprep.subr.mxu0 0.0
    %128 = vmatpush1.xpose.msra.mxu0 %v95
    %129 = vmatprep.subr.mxu0 0.0
    %130 = vmatpush1.xpose.msra.mxu0 0.0
    %131 = vmatprep.subr.mxu0 0.0
    %132 = vmatpush1.xpose.msra.mxu0 0.0
    %133 = vmatprep.subr.mxu0 0.0
    %134 = vmatpush1.xpose.msra.mxu0 0.0
    %135 = vmatprep.subr.mxu0 0.0
    %136 = vmatpush1.xpose.msra.mxu0 0.0
    %137 = vmatprep.subr.mxu0 0.0
    %138 = vmatpush1.xpose.msra.mxu0 0.0
    %139 = vmatprep.subr.mxu0 0.0
    %140 = vmatpush1.xpose.msra.mxu0 0.0
    %141 = vmatprep.subr.mxu0 0.0
    %142 = vmatpush1.xpose.msra.mxu0 0.0
    %143 = vmatprep.subr.mxu0 0.0
    %144 = vmatpush1.xpose.msra.mxu0 0.0
    %145 = vmatprep.subr.mxu0 0.0
    %146 = vmatpush1.xpose.msra.mxu0 0.0
    %147 = vmatprep.subr.mxu0 0.0
    %148 = vmatpush1.xpose.msra.mxu0 0.0
    %149 = vmatprep.subr.mxu0 0.0
    %150 = vmatpush1.xpose.msra.mxu0 0.0
    %151 = vmatprep.subr.mxu0 0.0
    %152 = vmatpush1.xpose.msra.mxu0 0.0
    %153 = vmatprep.subr.mxu0 0.0
    %154 = vmatpush1.xpose.msra.mxu0 0.0
    %155 = vmatprep.subr.mxu0 0.0
    %156 = vmatpush1.xpose.msra.mxu0 0.0
    %157 = vmatprep.subr.mxu0 0.0
    %158 = vmatpush1.xpose.msra.mxu0 0.0
    %159 = vmatprep.subr.mxu0 0.0
    %160 = vmatpush1.xpose.msra.mxu0 0.0
    %161 = vmatprep.mubr.f32.mxu0 0.0
    %162 = vmatmul.mubr.f32.gmra.mrb[0].mxu0 %v47
    %v163 = vpop.f32.mrb[0].mxu0
    %v164 = vadd.f32 %v43, %v163
    %v165 = vpop.f32.mrb[0].mxu0
    %166 = vdwg.mxu0
    %v167 = vld [vmem:[%s3] sm:$0xff]
    %v168 = vld [vmem:[%s3 + $0x8] sm:$0xff]
    %v169 = vld [vmem:[%s3 + $0x10] sm:$0xff]
    %v170 = vld [vmem:[%s3 + $0x18] sm:$0xff]
    %v171 = vld [vmem:[%s3 + $0x20] sm:$0xff]
    %v172 = vld [vmem:[%s3 + $0x28] sm:$0xff]
    %v173 = vld [vmem:[%s3 + $0x30] sm:$0xff]
    %v174 = vld [vmem:[%s3 + $0x38] sm:$0xff]
    %v175 = vld [vmem:[%s3 + $0x40] sm:$0xff]
    %v176 = vld [vmem:[%s3 + $0x48] sm:$0xff]
    %v177 = vld [vmem:[%s3 + $0x50] sm:$0xff]
    %v178 = vld [vmem:[%s3 + $0x58] sm:$0xff]
    %v179 = vld [vmem:[%s3 + $0x60] sm:$0xff]
    %v180 = vld [vmem:[%s3 + $0x68] sm:$0xff]
    %v181 = vld [vmem:[%s3 + $0x70] sm:$0xff]
    %v182 = vld [vmem:[%s3 + $0x78] sm:$0xff]
    %v183 = vld [vmem:[%s4] sm:$0x1]
    %v185 = vlaneseq
    %v186 = vshrl.u32 %v185, 7
    %v187 = vsub.s32 0, %v186
    %v188 = vrot.slane %v183, %v187
    %190 = vmatprep.subr.mxu0 0.0
    %191 = vmatpush1.xpose.msra.mxu0 %v167
    %192 = vmatprep.subr.mxu0 0.0
    %193 = vmatpush1.xpose.msra.mxu0 %v168
    %194 = vmatprep.subr.mxu0 0.0
    %195 = vmatpush1.xpose.msra.mxu0 %v169
    %196 = vmatprep.subr.mxu0 0.0
    %197 = vmatpush1.xpose.msra.mxu0 %v170
    %198 = vmatprep.subr.mxu0 0.0
    %199 = vmatpush1.xpose.msra.mxu0 %v171
    %200 = vmatprep.subr.mxu0 0.0
    %201 = vmatpush1.xpose.msra.mxu0 %v172
    %202 = vmatprep.subr.mxu0 0.0
    %203 = vmatpush1.xpose.msra.mxu0 %v173
    %204 = vmatprep.subr.mxu0 0.0
    %205 = vmatpush1.xpose.msra.mxu0 %v174
    %206 = vmatprep.subr.mxu0 0.0
    %207 = vmatpush1.xpose.msra.mxu0 %v175
    %208 = vmatprep.subr.mxu0 0.0
    %209 = vmatpush1.xpose.msra.mxu0 %v176
    %210 = vmatprep.subr.mxu0 0.0
    %211 = vmatpush1.xpose.msra.mxu0 %v177
    %212 = vmatprep.subr.mxu0 0.0
    %213 = vmatpush1.xpose.msra.mxu0 %v178
    %214 = vmatprep.subr.mxu0 0.0
    %215 = vmatpush1.xpose.msra.mxu0 %v179
    %216 = vmatprep.subr.mxu0 0.0
    %217 = vmatpush1.xpose.msra.mxu0 %v180
    %218 = vmatprep.subr.mxu0 0.0
    %219 = vmatpush1.xpose.msra.mxu0 %v181
    %220 = vmatprep.subr.mxu0 0.0
    %221 = vmatpush1.xpose.msra.mxu0 %v182
    %222 = vmatprep.subr.mxu0 0.0
    %223 = vmatpush1.xpose.msra.mxu0 0.0
    %224 = vmatprep.subr.mxu0 0.0
    %225 = vmatpush1.xpose.msra.mxu0 0.0
    %226 = vmatprep.subr.mxu0 0.0
    %227 = vmatpush1.xpose.msra.mxu0 0.0
    %228 = vmatprep.subr.mxu0 0.0
    %229 = vmatpush1.xpose.msra.mxu0 0.0
    %230 = vmatprep.subr.mxu0 0.0
    %231 = vmatpush1.xpose.msra.mxu0 0.0
    %232 = vmatprep.subr.mxu0 0.0
    %233 = vmatpush1.xpose.msra.mxu0 0.0
    %234 = vmatprep.subr.mxu0 0.0
    %235 = vmatpush1.xpose.msra.mxu0 0.0
    %236 = vmatprep.subr.mxu0 0.0
    %237 = vmatpush1.xpose.msra.mxu0 0.0
    %238 = vmatprep.subr.mxu0 0.0
    %239 = vmatpush1.xpose.msra.mxu0 0.0
    %240 = vmatprep.subr.mxu0 0.0
    %241 = vmatpush1.xpose.msra.mxu0 0.0
    %242 = vmatprep.subr.mxu0 0.0
    %243 = vmatpush1.xpose.msra.mxu0 0.0
    %244 = vmatprep.subr.mxu0 0.0
    %245 = vmatpush1.xpose.msra.mxu0 0.0
    %246 = vmatprep.subr.mxu0 0.0
    %247 = vmatpush1.xpose.msra.mxu0 0.0
    %248 = vmatprep.subr.mxu0 0.0
    %249 = vmatpush1.xpose.msra.mxu0 0.0
    %250 = vmatprep.subr.mxu0 0.0
    %251 = vmatpush1.xpose.msra.mxu0 0.0
    %252 = vmatprep.subr.mxu0 0.0
    %253 = vmatpush1.xpose.msra.mxu0 0.0
    %254 = vmatprep.mubr.f32.mxu0 0.0
    %255 = vmatmul.mubr.f32.gmra.mrb[0].mxu0 %v164
    %v256 = vpop.f32.mrb[0].mxu0
    %v257 = vadd.f32 %v188, %v256
    %v258 = vpop.f32.mrb[0].mxu0
    %259 = vdwg.mxu0
    %260 = vst [vmem:[#allocation2] sm:$0xff] %v257
    // Predicated region
    $region22: #{tpu_custom_call.1} parent=1 // pred_check
      _
    $region23: #{tpu_custom_call.1} parent=1 // pred_check_branch
      %262 = sbr.rel (0) target = $region25
    $region24: #{tpu_custom_call.1} parent=1 // pred_region
      %s264 = ssub.s32 128, 128
      %265 = vsyncadd [#allocation3], %s264
      %s267 = sshll.u32 [#allocation2], 4
      %s268 = int_to_ptr.vmem [resolvable:$true] %s267
      %270 = dma.vmem_to_hbm [thread:$0]  %s268, 128, %s5, [#allocation3]
    $region25: #{tpu_custom_call.1} parent=1 // pred_fallthru
      _
    // Predicated region
    $region26: #{tpu_custom_call.1} parent=1 // pred_check
      _
    $region27: #{tpu_custom_call.1} parent=1 // pred_check_branch
      %272 = sbr.rel (0) target = $region29
    $region28: #{tpu_custom_call.1} parent=1 // pred_region
      %273 = dma.done [#allocation3], 128
    $region29: #{tpu_custom_call.1} parent=1 // pred_fallthru
      _
    %274 = vsyncpa [#allocation3], 1

</llo_original>
